<compile_context>
chip_gen: v7x
topology: tpu7x:2x2x1
jax: 0.10.0
libtpu: 0.0.40
codegen_flags: <defaults>
</compile_context>

<pallas_src>
import functools
import math

import jax
import jax.numpy as jnp
import numpy as np
from jax.experimental import pallas as pl
from jax.experimental.pallas import tpu as pltpu


# --------------------------------------------------------------------------
# Kernel 1: fused Q/K/V projection -> head-major (B, H, S, Dh)
# --------------------------------------------------------------------------

def _qkv_projection_kernel(num_heads, head_size, scale,
                           x_ref, wq_ref, bq_ref, wk_ref, bk_ref, wv_ref, bv_ref,
                           q_ref, k_ref, v_ref):
    x = x_ref[0]                                            # (TS, D)
    ts = x.shape[0]

    def project(w_ref, b_ref):
        # One fat (TS, D) x (D, D) MXU matmul, f32 accumulation.
        return jnp.dot(x, w_ref[...],
                       preferred_element_type=jnp.float32) + b_ref[...]

    q = project(wq_ref, bq_ref) * scale                     # fold 1/sqrt(Dh) once
    k = project(wk_ref, bk_ref)
    v = project(wv_ref, bv_ref)

    def to_head_major(y):
        # (TS, D) -> (H, TS, Dh); single relayout per projected tile, kept out
        # of the attention kernel's hot kv loop.
        return jnp.swapaxes(y.reshape(ts, num_heads, head_size), 0, 1)

    q_ref[0] = to_head_major(q).astype(q_ref.dtype)
    k_ref[0] = to_head_major(k).astype(k_ref.dtype)
    v_ref[0] = to_head_major(v).astype(v_ref.dtype)


# --------------------------------------------------------------------------
# Kernel 2: flash-style attention over pre-projected head-major Q/K/V
# --------------------------------------------------------------------------

def _flash_attention_kernel(approx_recip,
                            q_ref, k_ref, v_ref, o_ref,
                            m_scr, l_scr, acc_scr):
    ki = pl.program_id(2)

    @pl.when(ki == 0)
    def _init():
        m_scr[...] = jnp.full(m_scr.shape, -jnp.inf, jnp.float32)
        l_scr[...] = jnp.zeros(l_scr.shape, jnp.float32)
        acc_scr[...] = jnp.zeros(acc_scr.shape, jnp.float32)

    q = q_ref[0]                                            # (H, TQ, Dh) pre-scaled
    k = k_ref[0]                                            # (H, TK, Dh)
    v = v_ref[0]                                            # (H, TK, Dh)

    # Scores for all heads in one batched matmul, f32 accumulation.
    s = jnp.einsum('hqd,hkd->hqk', q, k, preferred_element_type=jnp.float32)

    m_prev = m_scr[...]                                     # (H, TQ, 1)
    m_new = jnp.maximum(m_prev, jnp.max(s, axis=-1, keepdims=True))
    alpha = jnp.exp(m_prev - m_new)
    p = jnp.exp(s - m_new)                                  # f32 (v5e-safe EUP math)
    # TODO(synk): dropout on attention probs skipped (eval-mode identity).
    l_scr[...] = alpha * l_scr[...] + jnp.sum(p, axis=-1, keepdims=True)

    pv = jnp.einsum('hqk,hkd->hqd', p.astype(v.dtype), v,
                    preferred_element_type=jnp.float32)
    acc_scr[...] = alpha * acc_scr[...] + pv
    m_scr[...] = m_new

    @pl.when(ki == pl.num_programs(2) - 1)
    def _finalize():
        inv_l = pl.reciprocal(l_scr[...], approx=approx_recip)   # EUP slot
        ctx = acc_scr[...] * inv_l                               # (H, TQ, Dh) f32
        tq = ctx.shape[1]
        # Merge heads once per q tile -> lane-dense (TQ, D) store.
        ctx = jnp.swapaxes(ctx, 0, 1).reshape(tq, -1)
        o_ref[0] = ctx.astype(o_ref.dtype)


# --------------------------------------------------------------------------
# Wrapper
# --------------------------------------------------------------------------

def _pick_tile(s, preferred=256):
    """Largest seq tile <= preferred that divides s and is a multiple of 8."""
    if s <= preferred:
        return s
    for t in range(preferred, 7, -8):            # 256, 248, ..., 8
        if s % t == 0:
            return t
    raise ValueError(
        f"sequence length {s} has no multiple-of-8 divisor <= {preferred}; "
        "pad the sequence or pass explicit tile sizes")


def self_attention(x, params, num_heads, *, tq=None, tk=None, ts=None, precise=False):
    """SelfAttention.forward: (B, S, D) -> squeeze(context of shape (B, S, D))."""
    B, S, D = x.shape
    if D % num_heads != 0:
        raise ValueError("d_model must be a multiple of num_attention_heads")
    Dh = D // num_heads
    scale = 1.0 / math.sqrt(Dh)

    tq = tq or _pick_tile(S)
    tk = tk or _pick_tile(S)
    ts = ts or _pick_tile(S)
    for name, t in (("tq", tq), ("tk", tk), ("ts", ts)):
        if S % t != 0:
            raise ValueError(f"{name}={t} must divide sequence length {S}")
    nq, nk, ns = S // tq, S // tk, S // ts

    in_dtype = x.dtype
    if precise or not (in_dtype == jnp.float32 or in_dtype == jnp.bfloat16):
        compute_dtype = in_dtype
    else:
        compute_dtype = jnp.bfloat16          # bf16-native MXU, f32 accumulation
    itm_in = np.dtype(in_dtype).itemsize
    itm_c = np.dtype(compute_dtype).itemsize

    # Weights stored pre-transposed as (in, out); biases as (1, D) slabs.
    wq = params["wq"].astype(in_dtype); bq = params["bq"].astype(in_dtype)
    wk = params["wk"].astype(in_dtype); bk = params["bk"].astype(in_dtype)
    wv = params["wv"].astype(in_dtype); bv = params["bv"].astype(in_dtype)

    def _vmem_limit(est_bytes):
        # Clamp to 56 MiB: stays below v7x's 64 MiB physical VMEM with headroom
        # for Mosaic-internal scratch; comfortably within v5e/v6e's 128 MiB.
        return int(min(max(2 * est_bytes, 16 * 1024 * 1024), 56 * 1024 * 1024))

    # ------------------ pass 1: Q/K/V projection (head-major) ----------------
    qkv_shape = jax.ShapeDtypeStruct((B, num_heads, S, Dh), compute_dtype)
    const2 = lambda b, si: (0, 0)
    hm_spec = pl.BlockSpec((1, num_heads, ts, Dh), lambda b, si: (b, 0, si, 0))

    proj_vmem = (2 * ts * D * itm_in                 # x tiles (double-buffered)
                 + 2 * 3 * (D * D + D) * itm_in      # W/b blocks (double-buffered)
                 + 2 * 3 * ts * D * itm_c            # q/k/v output tiles
                 + 4 * 3 * ts * D)                   # in-kernel f32 intermediates
    proj_cost = pl.CostEstimate(
        flops=3 * 2 * B * S * D * D,
        transcendentals=0,
        bytes_accessed=itm_in * (B * S * D + 3 * (D * D + D)) + itm_c * 3 * B * S * D)

    q_hm, k_hm, v_hm = pl.pallas_call(
        functools.partial(_qkv_projection_kernel, num_heads, Dh, scale),
        out_shape=(qkv_shape, qkv_shape, qkv_shape),
        grid_spec=pltpu.PrefetchScalarGridSpec(
            num_scalar_prefetch=0,
            grid=(B, ns),
            in_specs=[
                pl.BlockSpec((1, ts, D), lambda b, si: (b, si, 0)),   # x tile
                pl.BlockSpec((D, D), const2),                         # Wq
                pl.BlockSpec((1, D), const2),                         # bq
                pl.BlockSpec((D, D), const2),                         # Wk
                pl.BlockSpec((1, D), const2),                         # bk
                pl.BlockSpec((D, D), const2),                         # Wv
                pl.BlockSpec((1, D), const2),                         # bv
            ],
            out_specs=(hm_spec, hm_spec, hm_spec),
        ),
        compiler_params=pltpu.CompilerParams(
            dimension_semantics=("parallel", "parallel"),
            vmem_limit_bytes=_vmem_limit(proj_vmem),
        ),
        cost_estimate=proj_cost,
    )(x, wq, bq, wk, bk, wv, bv)

    # ------------------ pass 2: flash attention + head merge -----------------
    attn_vmem = (2 * num_heads * tq * Dh * itm_c             # Q tiles
                 + 2 * 2 * num_heads * tk * Dh * itm_c       # K/V tiles
                 + 2 * tq * D * itm_in                       # output tiles
                 + 4 * num_heads * tq * (Dh + 2)             # f32 acc/m/l scratch
                 + 4 * num_heads * tq * tk)                  # f32 score/prob tile
    attn_cost = pl.CostEstimate(
        flops=4 * B * S * S * D,                             # QK^T + PV
        transcendentals=B * num_heads * S * S,
        bytes_accessed=itm_c * (B * S * D + 2 * nq * B * S * D) + itm_in * B * S * D)

    out = pl.pallas_call(
        functools.partial(_flash_attention_kernel, not precise),
        out_shape=jax.ShapeDtypeStruct((B, S, D), in_dtype),
        grid_spec=pltpu.PrefetchScalarGridSpec(
            num_scalar_prefetch=0,
            grid=(B, nq, nk),
            in_specs=[
                pl.BlockSpec((1, num_heads, tq, Dh), lambda b, qi, ki: (b, 0, qi, 0)),
                pl.BlockSpec((1, num_heads, tk, Dh), lambda b, qi, ki: (b, 0, ki, 0)),
                pl.BlockSpec((1, num_heads, tk, Dh), lambda b, qi, ki: (b, 0, ki, 0)),
            ],
            out_specs=pl.BlockSpec((1, tq, D), lambda b, qi, ki: (b, qi, 0)),
            scratch_shapes=[
                pltpu.VMEM((num_heads, tq, 1), jnp.float32),   # running max
                pltpu.VMEM((num_heads, tq, 1), jnp.float32),   # running denom
                pltpu.VMEM((num_heads, tq, Dh), jnp.float32),  # accumulator
            ],
        ),
        compiler_params=pltpu.CompilerParams(
            dimension_semantics=("parallel", "parallel", "arbitrary"),
            vmem_limit_bytes=_vmem_limit(attn_vmem),
        ),
        cost_estimate=attn_cost,
    )(q_hm, k_hm, v_hm)

    # PyTorch forward ends with `.squeeze()` (drops all size-1 dims).
    return jnp.squeeze(out)


# --------------------------------------------------------------------------
# Deterministic parameter init (PyTorch nn.Linear-like uniform)
# --------------------------------------------------------------------------

def init_params(key, d_model):
    ks = jax.random.split(key, 6)
    bound = 1.0 / math.sqrt(d_model)
    u = lambda k, shape: jax.random.uniform(k, shape, jnp.float32, -bound, bound)
    return dict(
        wq=u(ks[0], (d_model, d_model)), bq=u(ks[1], (1, d_model)),
        wk=u(ks[2], (d_model, d_model)), bk=u(ks[3], (1, d_model)),
        wv=u(ks[4], (d_model, d_model)), bv=u(ks[5], (1, d_model)),
    )


# --------------------------------------------------------------------------
# Pure-JAX reference (mirrors SelfAttention.forward, dropout = identity)
# --------------------------------------------------------------------------

def _ref_self_attention(x, p, num_heads):
    B, S, D = x.shape
    Dh = D // num_heads
    q = x @ p["wq"] + p["bq"]
    k = x @ p["wk"] + p["bk"]
    v = x @ p["wv"] + p["bv"]
    q = q.reshape(B, S, num_heads, Dh).transpose(0, 2, 1, 3)
    k = k.reshape(B, S, num_heads, Dh).transpose(0, 2, 1, 3)
    v = v.reshape(B, S, num_heads, Dh).transpose(0, 2, 1, 3)
    s = jnp.einsum("bhqd,bhkd->bhqk", q, k) / math.sqrt(Dh)
    probs = jax.nn.softmax(s, axis=-1)
    ctx = jnp.einsum("bhqk,bhkd->bhqd", probs, v)
    ctx = ctx.transpose(0, 2, 1, 3).reshape(B, S, D)
    return jnp.squeeze(ctx)


# --------------------------------------------------------------------------
# Demo / correctness check
# --------------------------------------------------------------------------

if __name__ == "__main__":
    B, S, D, H = 2, 8, 32, 4          # batch, seq, d_model, heads

    key = jax.random.PRNGKey(0)
    kx, kp = jax.random.split(key)
    x = jax.random.normal(kx, (B, S, D), jnp.float32)
    params = init_params(kp, D)
    ref = _ref_self_attention(x, params, H)

    # Default path: f32 inputs, bf16 MXU matmuls with f32 accumulation.
    out = jax.block_until_ready(self_attention(x, params, H))
    np.testing.assert_allclose(np.asarray(out), np.asarray(ref),
                               rtol=2e-2, atol=2e-2)

    # Precise path: f32 matmuls end-to-end, exact reciprocal.
    out_p = jax.block_until_ready(self_attention(x, params, H, precise=True))
    np.testing.assert_allclose(np.asarray(out_p), np.asarray(ref),
                               rtol=2e-3, atol=2e-3)

    # bf16-input path (bf16 MXU matmuls, f32 softmax stats); loose check vs f32 ref.
    out16 = jax.block_until_ready(self_attention(x.astype(jnp.bfloat16), params, H))
    np.testing.assert_allclose(np.asarray(out16.astype(jnp.float32)),
                               np.asarray(ref), rtol=1e-1, atol=1e-1)

    print("KERNEL_OK")
</pallas_src>

<mosaic_0001>
module attributes {stable_mosaic.version = 11 : i64} {
  func.func @_qkv_projection_kernel(%arg0: i32, %arg1: i32, %arg2: memref<1x8x32xf32, #tpu.memory_space<vmem>>, %arg3: memref<32x32xf32, #tpu.memory_space<vmem>>, %arg4: memref<1x32xf32, #tpu.memory_space<vmem>>, %arg5: memref<32x32xf32, #tpu.memory_space<vmem>>, %arg6: memref<1x32xf32, #tpu.memory_space<vmem>>, %arg7: memref<32x32xf32, #tpu.memory_space<vmem>>, %arg8: memref<1x32xf32, #tpu.memory_space<vmem>>, %arg9: memref<1x4x8x8xbf16, #tpu.memory_space<vmem>>, %arg10: memref<1x4x8x8xbf16, #tpu.memory_space<vmem>>, %arg11: memref<1x4x8x8xbf16, #tpu.memory_space<vmem>>) attributes {dimension_semantics = [#tpu.dimension_semantics<parallel>, #tpu.dimension_semantics<parallel>], iteration_bounds = array<i64: 2, 1>, scalar_prefetch = 0 : i64, scratch_operands = 0 : i64, tpu.core_type = #tpu.core_type<tc>, window_params = [{transform_indices = @transform_0, window_bounds = array<i64: 1, 8, 32>}, {pipeline_mode = #tpu.pipeline_mode<synchronous>, transform_indices = @transform_1, window_bounds = array<i64: 32, 32>}, {pipeline_mode = #tpu.pipeline_mode<synchronous>, transform_indices = @transform_2, window_bounds = array<i64: 1, 32>}, {pipeline_mode = #tpu.pipeline_mode<synchronous>, transform_indices = @transform_3, window_bounds = array<i64: 32, 32>}, {pipeline_mode = #tpu.pipeline_mode<synchronous>, transform_indices = @transform_4, window_bounds = array<i64: 1, 32>}, {pipeline_mode = #tpu.pipeline_mode<synchronous>, transform_indices = @transform_5, window_bounds = array<i64: 32, 32>}, {pipeline_mode = #tpu.pipeline_mode<synchronous>, transform_indices = @transform_6, window_bounds = array<i64: 1, 32>}, {transform_indices = @transform_7, window_bounds = array<i64: 1, 4, 8, 8>}, {transform_indices = @transform_8, window_bounds = array<i64: 1, 4, 8, 8>}, {transform_indices = @transform_9, window_bounds = array<i64: 1, 4, 8, 8>}]} {
    %c0 = arith.constant 0 : index
    %c0_0 = arith.constant 0 : index
    %c0_1 = arith.constant 0 : index
    %0 = vector.load %arg2[%c0, %c0_0, %c0_1] : memref<1x8x32xf32, #tpu.memory_space<vmem>>, vector<1x8x32xf32>
    %1 = vector.shape_cast %0 : vector<1x8x32xf32> to vector<8x32xf32>
    %c0_2 = arith.constant 0 : index
    %c0_3 = arith.constant 0 : index
    %2 = vector.load %arg3[%c0_2, %c0_3] : memref<32x32xf32, #tpu.memory_space<vmem>>, vector<32x32xf32>
    %cst = arith.constant dense<0.000000e+00> : vector<8x32xf32>
    %3 = tpu.matmul %1, %2, %cst {dimension_numbers = #tpu.dot_dimension_numbers<[1], [0], [0], [1], [0, 0, 1, 1], [], []>} : vector<8x32xf32>, vector<32x32xf32>, vector<8x32xf32> -> vector<8x32xf32>
    %c0_4 = arith.constant 0 : index
    %c0_5 = arith.constant 0 : index
    %4 = vector.load %arg4[%c0_4, %c0_5] : memref<1x32xf32, #tpu.memory_space<vmem>>, vector<1x32xf32>
    %5 = vector.broadcast %4 : vector<1x32xf32> to vector<8x32xf32>
    %6 = arith.addf %3, %5 : vector<8x32xf32>
    %cst_6 = arith.constant 0.353553385 : f32
    %7 = vector.broadcast %cst_6 : f32 to vector<8x32xf32>
    %8 = arith.mulf %6, %7 : vector<8x32xf32>
    %c0_7 = arith.constant 0 : index
    %c0_8 = arith.constant 0 : index
    %9 = vector.load %arg5[%c0_7, %c0_8] : memref<32x32xf32, #tpu.memory_space<vmem>>, vector<32x32xf32>
    %cst_9 = arith.constant dense<0.000000e+00> : vector<8x32xf32>
    %10 = tpu.matmul %1, %9, %cst_9 {dimension_numbers = #tpu.dot_dimension_numbers<[1], [0], [0], [1], [0, 0, 1, 1], [], []>} : vector<8x32xf32>, vector<32x32xf32>, vector<8x32xf32> -> vector<8x32xf32>
    %c0_10 = arith.constant 0 : index
    %c0_11 = arith.constant 0 : index
    %11 = vector.load %arg6[%c0_10, %c0_11] : memref<1x32xf32, #tpu.memory_space<vmem>>, vector<1x32xf32>
    %12 = vector.broadcast %11 : vector<1x32xf32> to vector<8x32xf32>
    %13 = arith.addf %10, %12 : vector<8x32xf32>
    %c0_12 = arith.constant 0 : index
    %c0_13 = arith.constant 0 : index
    %14 = vector.load %arg7[%c0_12, %c0_13] : memref<32x32xf32, #tpu.memory_space<vmem>>, vector<32x32xf32>
    %cst_14 = arith.constant dense<0.000000e+00> : vector<8x32xf32>
    %15 = tpu.matmul %1, %14, %cst_14 {dimension_numbers = #tpu.dot_dimension_numbers<[1], [0], [0], [1], [0, 0, 1, 1], [], []>} : vector<8x32xf32>, vector<32x32xf32>, vector<8x32xf32> -> vector<8x32xf32>
    %c0_15 = arith.constant 0 : index
    %c0_16 = arith.constant 0 : index
    %16 = vector.load %arg8[%c0_15, %c0_16] : memref<1x32xf32, #tpu.memory_space<vmem>>, vector<1x32xf32>
    %17 = vector.broadcast %16 : vector<1x32xf32> to vector<8x32xf32>
    %18 = arith.addf %15, %17 : vector<8x32xf32>
    %19 = vector.shape_cast %8 : vector<8x32xf32> to vector<8x4x8xf32>
    %20 = tpu.transpose %19, [1, 0, 2] : vector<8x4x8xf32> -> vector<4x8x8xf32>
    %21 = arith.truncf %20 : vector<4x8x8xf32> to vector<4x8x8xbf16>
    %c0_17 = arith.constant 0 : index
    %c0_18 = arith.constant 0 : index
    %c0_19 = arith.constant 0 : index
    %c0_20 = arith.constant 0 : index
    %22 = vector.load %arg9[%c0_17, %c0_18, %c0_19, %c0_20] : memref<1x4x8x8xbf16, #tpu.memory_space<vmem>>, vector<1x4x8x8xbf16>
    %23 = vector.shape_cast %22 : vector<1x4x8x8xbf16> to vector<4x8x8xbf16>
    %24 = vector.shape_cast %21 : vector<4x8x8xbf16> to vector<1x4x8x8xbf16>
    tpu.vector_store %arg9[%c0_17, %c0_18, %c0_19, %c0_20], %24 {strides = array<i32>} : memref<1x4x8x8xbf16, #tpu.memory_space<vmem>>, vector<1x4x8x8xbf16>,
    %25 = vector.shape_cast %13 : vector<8x32xf32> to vector<8x4x8xf32>
    %26 = tpu.transpose %25, [1, 0, 2] : vector<8x4x8xf32> -> vector<4x8x8xf32>
    %27 = arith.truncf %26 : vector<4x8x8xf32> to vector<4x8x8xbf16>
    %c0_21 = arith.constant 0 : index
    %c0_22 = arith.constant 0 : index
    %c0_23 = arith.constant 0 : index
    %c0_24 = arith.constant 0 : index
    %28 = vector.load %arg10[%c0_21, %c0_22, %c0_23, %c0_24] : memref<1x4x8x8xbf16, #tpu.memory_space<vmem>>, vector<1x4x8x8xbf16>
    %29 = vector.shape_cast %28 : vector<1x4x8x8xbf16> to vector<4x8x8xbf16>
    %30 = vector.shape_cast %27 : vector<4x8x8xbf16> to vector<1x4x8x8xbf16>
    tpu.vector_store %arg10[%c0_21, %c0_22, %c0_23, %c0_24], %30 {strides = array<i32>} : memref<1x4x8x8xbf16, #tpu.memory_space<vmem>>, vector<1x4x8x8xbf16>,
    %31 = vector.shape_cast %18 : vector<8x32xf32> to vector<8x4x8xf32>
    %32 = tpu.transpose %31, [1, 0, 2] : vector<8x4x8xf32> -> vector<4x8x8xf32>
    %33 = arith.truncf %32 : vector<4x8x8xf32> to vector<4x8x8xbf16>
    %c0_25 = arith.constant 0 : index
    %c0_26 = arith.constant 0 : index
    %c0_27 = arith.constant 0 : index
    %c0_28 = arith.constant 0 : index
    %34 = vector.load %arg11[%c0_25, %c0_26, %c0_27, %c0_28] : memref<1x4x8x8xbf16, #tpu.memory_space<vmem>>, vector<1x4x8x8xbf16>
    %35 = vector.shape_cast %34 : vector<1x4x8x8xbf16> to vector<4x8x8xbf16>
    %36 = vector.shape_cast %33 : vector<4x8x8xbf16> to vector<1x4x8x8xbf16>
    tpu.vector_store %arg11[%c0_25, %c0_26, %c0_27, %c0_28], %36 {strides = array<i32>} : memref<1x4x8x8xbf16, #tpu.memory_space<vmem>>, vector<1x4x8x8xbf16>,
    return
  }
  func.func @transform_0(%arg0: i32, %arg1: i32) -> (i32, i32, i32) {
    %c0_i32 = arith.constant 0 : i32
    %c0_i32_0 = arith.constant 0 : i32
    return %arg0, %arg1, %c0_i32 : i32, i32, i32
  }
  func.func @transform_1(%arg0: i32, %arg1: i32) -> (i32, i32) {
    %c0_i32 = arith.constant 0 : i32
    %c0_i32_0 = arith.constant 0 : i32
    %c0_i32_1 = arith.constant 0 : i32
    return %c0_i32, %c0_i32_0 : i32, i32
  }
  func.func @transform_2(%arg0: i32, %arg1: i32) -> (i32, i32) {
    %c0_i32 = arith.constant 0 : i32
    %c0_i32_0 = arith.constant 0 : i32
    %c0_i32_1 = arith.constant 0 : i32
    return %c0_i32, %c0_i32_0 : i32, i32
  }
  func.func @transform_3(%arg0: i32, %arg1: i32) -> (i32, i32) {
    %c0_i32 = arith.constant 0 : i32
    %c0_i32_0 = arith.constant 0 : i32
    %c0_i32_1 = arith.constant 0 : i32
    return %c0_i32, %c0_i32_0 : i32, i32
  }
  func.func @transform_4(%arg0: i32, %arg1: i32) -> (i32, i32) {
    %c0_i32 = arith.constant 0 : i32
    %c0_i32_0 = arith.constant 0 : i32
    %c0_i32_1 = arith.constant 0 : i32
    return %c0_i32, %c0_i32_0 : i32, i32
  }
  func.func @transform_5(%arg0: i32, %arg1: i32) -> (i32, i32) {
    %c0_i32 = arith.constant 0 : i32
    %c0_i32_0 = arith.constant 0 : i32
    %c0_i32_1 = arith.constant 0 : i32
    return %c0_i32, %c0_i32_0 : i32, i32
  }
  func.func @transform_6(%arg0: i32, %arg1: i32) -> (i32, i32) {
    %c0_i32 = arith.constant 0 : i32
    %c0_i32_0 = arith.constant 0 : i32
    %c0_i32_1 = arith.constant 0 : i32
    return %c0_i32, %c0_i32_0 : i32, i32
  }
  func.func @transform_7(%arg0: i32, %arg1: i32) -> (i32, i32, i32, i32) {
    %c0_i32 = arith.constant 0 : i32
    %c0_i32_0 = arith.constant 0 : i32
    %c0_i32_1 = arith.constant 0 : i32
    return %arg0, %c0_i32, %arg1, %c0_i32_0 : i32, i32, i32, i32
  }
  func.func @transform_8(%arg0: i32, %arg1: i32) -> (i32, i32, i32, i32) {
    %c0_i32 = arith.constant 0 : i32
    %c0_i32_0 = arith.constant 0 : i32
    %c0_i32_1 = arith.constant 0 : i32
    return %arg0, %c0_i32, %arg1, %c0_i32_0 : i32, i32, i32, i32
  }
  func.func @transform_9(%arg0: i32, %arg1: i32) -> (i32, i32, i32, i32) {
    %c0_i32 = arith.constant 0 : i32
    %c0_i32_0 = arith.constant 0 : i32
    %c0_i32_1 = arith.constant 0 : i32
    return %arg0, %c0_i32, %arg1, %c0_i32_0 : i32, i32, i32, i32
  }
}

</mosaic_0001>

<llo_original>
// kernel: tpu_custom_call.1
$region0: #{tpu_custom_call.1}
  #allocation0 [shape = 'u32[]', space=smem, size = 0x4, offset = 0x4, fixed_abs, tag = 'smem constant byte address 0x4 - core index']
  #allocation1 [shape = 'u32[144,128]{1,0:T(1,128)}', space=vmem, size = 0x12000, scoped, tag = 'internal scratch']
  %s0 = inlined_call_operand.hbm [shape: f32[2,8,32], index: 0, kind: input, shape index: {}]
  %s1 = inlined_call_operand.hbm [shape: f32[32,32], index: 1, kind: input, shape index: {}]
  %s2 = inlined_call_operand.vmem [shape: f32[1,32], index: 2, kind: input, shape index: {}]
  %s3 = inlined_call_operand.hbm [shape: f32[32,32], index: 3, kind: input, shape index: {}]
  %s4 = inlined_call_operand.vmem [shape: f32[1,32], index: 4, kind: input, shape index: {}]
  %s5 = inlined_call_operand.hbm [shape: f32[32,32], index: 5, kind: input, shape index: {}]
  %s6 = inlined_call_operand.vmem [shape: f32[1,32], index: 6, kind: input, shape index: {}]
  %s7 = inlined_call_operand.hbm [shape: bf16[2,4,8,8], index: 7, kind: output, shape index: {0}]
  %s8 = inlined_call_operand.hbm [shape: bf16[2,4,8,8], index: 8, kind: output, shape index: {1}]
  %s9 = inlined_call_operand.hbm [shape: bf16[2,4,8,8], index: 9, kind: output, shape index: {2}]
  %10 = xla_tuple %s7, %s8, %s9
  %s11 = sld [smem:[#allocation0]]
  $region93: #{tpu_custom_call.1} parent=0
    _
  %s13 = ssub.s32 1, %s11
  %s14 = scalar_select 0, %s13, %s11
  $region1: #{tpu_custom_call.1} parent=0
    #allocation2 [shape = 'u8[8192]{0}', space=vmem, size = 0x2000, scoped, tag = 'input window, operand 0']
    #allocation3 [shape = 's32[2]{0}', space=sflag, size = 0x8, scoped, tag = 'scoped memory for tpu_custom_call.1']
    #allocation4 [shape = 's32[2]{0}', space=sflag, size = 0x8, scoped, tag = 'scoped memory for tpu_custom_call.1']
    #allocation5 [shape = 'u8[16384]{0}', space=vmem, size = 0x4000, scoped, tag = 'input window, operand 1, single buffered']
    #allocation6 [shape = 's32[1]{0}', space=sflag, size = 0x4, scoped, tag = 'scoped memory for tpu_custom_call.1']
    #allocation7 [shape = 'u8[16384]{0}', space=vmem, size = 0x4000, scoped, tag = 'input window, operand 3, single buffered']
    #allocation8 [shape = 'u8[16384]{0}', space=vmem, size = 0x4000, scoped, tag = 'input window, operand 5, single buffered']
    #allocation9 [shape = 's32[1]{0}', space=sflag, size = 0x4, scoped, tag = 'scoped memory for tpu_custom_call.1']
    #allocation10 [shape = 'u8[16384]{0}', space=vmem, size = 0x4000, scoped, tag = 'output window, operand 0']
    #allocation11 [shape = 'u8[16384]{0}', space=vmem, size = 0x4000, scoped, tag = 'output window, operand 1']
    #allocation12 [shape = 's32[2]{0}', space=sflag, size = 0x8, scoped, tag = 'scoped memory for tpu_custom_call.1']
    #allocation13 [shape = 'u8[16384]{0}', space=vmem, size = 0x4000, scoped, tag = 'output window, operand 2']
    %15 = vsyncpa [#allocation3], 0
    %s16 = scalar_lea.sflag [#allocation3], 1
    %17 = vsyncpa %s16, 0
    %18 = vsyncpa [#allocation6], 0
    %19 = vsyncpa [#allocation9], 0
    %20 = vsyncpa [#allocation4], 0
    %s21 = scalar_lea.sflag [#allocation4], 1
    %22 = vsyncpa %s21, 0
    %23 = vsyncpa [#allocation12], 0
    %s24 = scalar_lea.sflag [#allocation12], 1
    %25 = vsyncpa %s24, 0
    loop: start=0, step=1, limit=4
    $region2: #{tpu_custom_call.1} parent=1 // loop_pre_header
      _
    $region3: #{tpu_custom_call.1} parent=1 // loop_header
      %s27 = sphi 0, %s31
      %p28 = scmp.ge.s32.totalorder %s27, 4
      %s34 = sphi 0, %s46
      %s35 = sphi 0, %s42
      %s36 = sphi 0, %s34
      %s37 = sphi 0, %s35
      %s38 = sphi 0, %s36
      %s39 = sphi 0, %s37
      %s51 = sphi 0, %s53
      %s54 = sphi 0, %s51
      %s55 = sphi 0, %s54
      %s71 = sphi 0, %s55
      %s75 = sphi 0, %s75
      %s77 = sphi 0, %s75
      %s78 = sphi 0, %s77
      %s92 = sphi 0, %s78
      %s96 = sphi 0, %s96
      %s98 = sphi 0, %s96
      %s99 = sphi 0, %s98
      %s113 = sphi 0, %s99
      %s117 = sphi 0, %s117
      %s119 = sphi 0, %s117
      %s120 = sphi 0, %s119
      %s134 = sphi 0, %s120
      %s138 = sphi 0, %s138
      %s140 = sphi 0, %s138
      %s141 = sphi 0, %s140
      %s155 = sphi 0, %s141
      %s159 = sphi 0, %s159
      %s161 = sphi 0, %s159
      %s162 = sphi 0, %s161
      %s176 = sphi 0, %s162
      %s180 = sphi 0, %s180
      %s182 = sphi 0, %s180
      %s183 = sphi 0, %s182
      %s197 = sphi 0, %s183
      %s205 = sphi 0, %s207
      %s208 = sphi 0, %s205
      %s209 = sphi 0, %s208
      %s225 = sphi 0, %s209
      %s233 = sphi 0, %s235
      %s236 = sphi 0, %s233
      %s237 = sphi 0, %s236
      %s253 = sphi 0, %s237
      %s261 = sphi 0, %s263
      %s264 = sphi 0, %s261
      %s265 = sphi 0, %s264
      %s281 = sphi 0, %s265
    $region4: #{tpu_custom_call.1} parent=1 // loop_header_branch
      %30 = sbr.rel (%p28) target = $region8
    $region5: #{tpu_custom_call.1} parent=1 // loop_body
      %s32 = ssub.s32 %s27, 1
      %s33 = ssub.s32 %s27, 2
      %s40 = sadd.s32 1, %s35
      %p41 = scmp.ge.s32.totalorder %s40, 1
      %s42 = scalar_select %p41, 0, %s40
      %s43 = sadd.s32 1, %s34
      %s44 = scalar_select %p41, %s43, %s34
      %p45 = scmp.ge.s32.totalorder %s44, 2
      %s46 = scalar_select %p45, 0, %s44
      %s47 = ssub.s32 %s34, %s46
      %s48 = ssub.s32 %s35, %s42
      %s49 = sor.u32 %s47, %s48
      %p50 = scmp.eq.s32.totalorder %s49, 0
      %s52 = sadd.s32 %s51, 1
      %s53 = scalar_select %p50, %s51, %s52
      %p56 = pneg %p50
      %p57 = scmp.eq.s32.totalorder %s27, 1
      %p58 = por %p56, %p57
      %p59 = scmp.ne.s32.totalorder %s51, %s54
      %p60 = scmp.eq.s32.totalorder %s27, 0
      %p61 = por %p59, %p60
      %p62 = scmp.ne.s32.totalorder %s51, %s54
      %p63 = scmp.eq.s32.totalorder %s32, 1
      %p64 = por %p62, %p63
      %p65 = scmp.ne.s32.totalorder %s54, %s55
      %p66 = scmp.eq.s32.totalorder %s32, 0
      %p67 = por %p65, %p66
      %p68 = scmp.ne.s32.totalorder %s54, %s55
      %p69 = scmp.eq.s32.totalorder %s33, 1
      %p70 = por %p68, %p69
      %p72 = scmp.ne.s32.totalorder %s55, %s71
      %p73 = scmp.eq.s32.totalorder %s33, 0
      %p74 = por %p72, %p73
      %s76 = sadd.s32 %s75, 1
      %p79 = scmp.eq.s32.totalorder %s27, 1
      %p80 = scmp.ne.s32.totalorder %s75, %s77
      %p81 = scmp.eq.s32.totalorder %s27, 0
      %p82 = por %p80, %p81
      %p83 = scmp.ne.s32.totalorder %s75, %s77
      %p84 = scmp.eq.s32.totalorder %s32, 1
      %p85 = por %p83, %p84
      %p86 = scmp.ne.s32.totalorder %s77, %s78
      %p87 = scmp.eq.s32.totalorder %s32, 0
      %p88 = por %p86, %p87
      %p89 = scmp.ne.s32.totalorder %s77, %s78
      %p90 = scmp.eq.s32.totalorder %s33, 1
      %p91 = por %p89, %p90
      %p93 = scmp.ne.s32.totalorder %s78, %s92
      %p94 = scmp.eq.s32.totalorder %s33, 0
      %p95 = por %p93, %p94
      %s97 = sadd.s32 %s96, 1
      %p100 = scmp.eq.s32.totalorder %s27, 1
      %p101 = scmp.ne.s32.totalorder %s96, %s98
      %p102 = scmp.eq.s32.totalorder %s27, 0
      %p103 = por %p101, %p102
      %p104 = scmp.ne.s32.totalorder %s96, %s98
      %p105 = scmp.eq.s32.totalorder %s32, 1
      %p106 = por %p104, %p105
      %p107 = scmp.ne.s32.totalorder %s98, %s99
      %p108 = scmp.eq.s32.totalorder %s32, 0
      %p109 = por %p107, %p108
      %p110 = scmp.ne.s32.totalorder %s98, %s99
      %p111 = scmp.eq.s32.totalorder %s33, 1
      %p112 = por %p110, %p111
      %p114 = scmp.ne.s32.totalorder %s99, %s113
      %p115 = scmp.eq.s32.totalorder %s33, 0
      %p116 = por %p114, %p115
      %s118 = sadd.s32 %s117, 1
      %p121 = scmp.eq.s32.totalorder %s27, 1
      %p122 = scmp.ne.s32.totalorder %s117, %s119
      %p123 = scmp.eq.s32.totalorder %s27, 0
      %p124 = por %p122, %p123
      %p125 = scmp.ne.s32.totalorder %s117, %s119
      %p126 = scmp.eq.s32.totalorder %s32, 1
      %p127 = por %p125, %p126
      %p128 = scmp.ne.s32.totalorder %s119, %s120
      %p129 = scmp.eq.s32.totalorder %s32, 0
      %p130 = por %p128, %p129
      %p131 = scmp.ne.s32.totalorder %s119, %s120
      %p132 = scmp.eq.s32.totalorder %s33, 1
      %p133 = por %p131, %p132
      %p135 = scmp.ne.s32.totalorder %s120, %s134
      %p136 = scmp.eq.s32.totalorder %s33, 0
      %p137 = por %p135, %p136
      %s139 = sadd.s32 %s138, 1
      %p142 = scmp.eq.s32.totalorder %s27, 1
      %p143 = scmp.ne.s32.totalorder %s138, %s140
      %p144 = scmp.eq.s32.totalorder %s27, 0
      %p145 = por %p143, %p144
      %p146 = scmp.ne.s32.totalorder %s138, %s140
      %p147 = scmp.eq.s32.totalorder %s32, 1
      %p148 = por %p146, %p147
      %p149 = scmp.ne.s32.totalorder %s140, %s141
      %p150 = scmp.eq.s32.totalorder %s32, 0
      %p151 = por %p149, %p150
      %p152 = scmp.ne.s32.totalorder %s140, %s141
      %p153 = scmp.eq.s32.totalorder %s33, 1
      %p154 = por %p152, %p153
      %p156 = scmp.ne.s32.totalorder %s141, %s155
      %p157 = scmp.eq.s32.totalorder %s33, 0
      %p158 = por %p156, %p157
      %s160 = sadd.s32 %s159, 1
      %p163 = scmp.eq.s32.totalorder %s27, 1
      %p164 = scmp.ne.s32.totalorder %s159, %s161
      %p165 = scmp.eq.s32.totalorder %s27, 0
      %p166 = por %p164, %p165
      %p167 = scmp.ne.s32.totalorder %s159, %s161
      %p168 = scmp.eq.s32.totalorder %s32, 1
      %p169 = por %p167, %p168
      %p170 = scmp.ne.s32.totalorder %s161, %s162
      %p171 = scmp.eq.s32.totalorder %s32, 0
      %p172 = por %p170, %p171
      %p173 = scmp.ne.s32.totalorder %s161, %s162
      %p174 = scmp.eq.s32.totalorder %s33, 1
      %p175 = por %p173, %p174
      %p177 = scmp.ne.s32.totalorder %s162, %s176
      %p178 = scmp.eq.s32.totalorder %s33, 0
      %p179 = por %p177, %p178
      %s181 = sadd.s32 %s180, 1
      %p184 = scmp.eq.s32.totalorder %s27, 1
      %p185 = scmp.ne.s32.totalorder %s180, %s182
      %p186 = scmp.eq.s32.totalorder %s27, 0
      %p187 = por %p185, %p186
      %p188 = scmp.ne.s32.totalorder %s180, %s182
      %p189 = scmp.eq.s32.totalorder %s32, 1
      %p190 = por %p188, %p189
      %p191 = scmp.ne.s32.totalorder %s182, %s183
      %p192 = scmp.eq.s32.totalorder %s32, 0
      %p193 = por %p191, %p192
      %p194 = scmp.ne.s32.totalorder %s182, %s183
      %p195 = scmp.eq.s32.totalorder %s33, 1
      %p196 = por %p194, %p195
      %p198 = scmp.ne.s32.totalorder %s183, %s197
      %p199 = scmp.eq.s32.totalorder %s33, 0
      %p200 = por %p198, %p199
      %s201 = ssub.s32 %s34, %s46
      %s202 = ssub.s32 %s35, %s42
      %s203 = sor.u32 %s201, %s202
      %p204 = scmp.eq.s32.totalorder %s203, 0
      %s206 = sadd.s32 %s205, 1
      %s207 = scalar_select %p204, %s205, %s206
      %p210 = pneg %p204
      %p211 = scmp.eq.s32.totalorder %s27, 1
      %p212 = por %p210, %p211
      %p213 = scmp.ne.s32.totalorder %s205, %s208
      %p214 = scmp.eq.s32.totalorder %s27, 0
      %p215 = por %p213, %p214
      %p216 = scmp.ne.s32.totalorder %s205, %s208
      %p217 = scmp.eq.s32.totalorder %s32, 1
      %p218 = por %p216, %p217
      %p219 = scmp.ne.s32.totalorder %s208, %s209
      %p220 = scmp.eq.s32.totalorder %s32, 0
      %p221 = por %p219, %p220
      %p222 = scmp.ne.s32.totalorder %s208, %s209
      %p223 = scmp.eq.s32.totalorder %s33, 1
      %p224 = por %p222, %p223
      %p226 = scmp.ne.s32.totalorder %s209, %s225
      %p227 = scmp.eq.s32.totalorder %s33, 0
      %p228 = por %p226, %p227
      %s229 = ssub.s32 %s34, %s46
      %s230 = ssub.s32 %s35, %s42
      %s231 = sor.u32 %s229, %s230
      %p232 = scmp.eq.s32.totalorder %s231, 0
      %s234 = sadd.s32 %s233, 1
      %s235 = scalar_select %p232, %s233, %s234
      %p238 = pneg %p232
      %p239 = scmp.eq.s32.totalorder %s27, 1
      %p240 = por %p238, %p239
      %p241 = scmp.ne.s32.totalorder %s233, %s236
      %p242 = scmp.eq.s32.totalorder %s27, 0
      %p243 = por %p241, %p242
      %p244 = scmp.ne.s32.totalorder %s233, %s236
      %p245 = scmp.eq.s32.totalorder %s32, 1
      %p246 = por %p244, %p245
      %p247 = scmp.ne.s32.totalorder %s236, %s237
      %p248 = scmp.eq.s32.totalorder %s32, 0
      %p249 = por %p247, %p248
      %p250 = scmp.ne.s32.totalorder %s236, %s237
      %p251 = scmp.eq.s32.totalorder %s33, 1
      %p252 = por %p250, %p251
      %p254 = scmp.ne.s32.totalorder %s237, %s253
      %p255 = scmp.eq.s32.totalorder %s33, 0
      %p256 = por %p254, %p255
      %s257 = ssub.s32 %s34, %s46
      %s258 = ssub.s32 %s35, %s42
      %s259 = sor.u32 %s257, %s258
      %p260 = scmp.eq.s32.totalorder %s259, 0
      %s262 = sadd.s32 %s261, 1
      %s263 = scalar_select %p260, %s261, %s262
      %p266 = pneg %p260
      %p267 = scmp.eq.s32.totalorder %s27, 1
      %p268 = por %p266, %p267
      %p269 = scmp.ne.s32.totalorder %s261, %s264
      %p270 = scmp.eq.s32.totalorder %s27, 0
      %p271 = por %p269, %p270
      %p272 = scmp.ne.s32.totalorder %s261, %s264
      %p273 = scmp.eq.s32.totalorder %s32, 1
      %p274 = por %p272, %p273
      %p275 = scmp.ne.s32.totalorder %s264, %s265
      %p276 = scmp.eq.s32.totalorder %s32, 0
      %p277 = por %p275, %p276
      %p278 = scmp.ne.s32.totalorder %s264, %s265
      %p279 = scmp.eq.s32.totalorder %s33, 1
      %p280 = por %p278, %p279
      %p282 = scmp.ne.s32.totalorder %s265, %s281
      %p283 = scmp.eq.s32.totalorder %s33, 0
      %p284 = por %p282, %p283
      %p285 = scmp.le.s32.totalorder 1, %s27
      %p286 = scmp.lt.s32.totalorder %s27, 3
      %p287 = pnand %p285, %p286
      %p288 = pneg %p287
      // Predicated region
      $region9: #{tpu_custom_call.1} parent=5 // pred_check
        _
      $region10: #{tpu_custom_call.1} parent=5 // pred_check_branch
        %290 = sbr.rel (%p287) target = $region12
      $region11: #{tpu_custom_call.1} parent=5 // pred_region
        %s291 = ssub.s32 %s27, 1
        // Predicated region
        $region13: #{tpu_custom_call.1} parent=11 // pred_check
          %p292 = pneg %p88
        $region14: #{tpu_custom_call.1} parent=11 // pred_check_branch
          %294 = sbr.rel (%p292) target = $region16
        $region15: #{tpu_custom_call.1} parent=11 // pred_region
          %s296 = ssub.s32 512, 512
          %297 = vsyncadd [#allocation6], %s296
          %s298 = sshll.u32 [#allocation5], 4
          %s299 = int_to_ptr.vmem [resolvable:$true] %s298
          %304 = dma.hbm_to_vmem [thread:$0]  %s1, 512, %s299, [#allocation6], 128, 128, 8
        $region16: #{tpu_custom_call.1} parent=11 // pred_fallthru
          _
        // Predicated region
        $region17: #{tpu_custom_call.1} parent=11 // pred_check
          %p305 = pneg %p109
        $region18: #{tpu_custom_call.1} parent=11 // pred_check_branch
          %307 = sbr.rel (%p305) target = $region20
        $region19: #{tpu_custom_call.1} parent=11 // pred_region
          _
        $region20: #{tpu_custom_call.1} parent=11 // pred_fallthru
          _
        // Predicated region
        $region21: #{tpu_custom_call.1} parent=11 // pred_check
          %p308 = pneg %p130
        $region22: #{tpu_custom_call.1} parent=11 // pred_check_branch
          %310 = sbr.rel (%p308) target = $region24
        $region23: #{tpu_custom_call.1} parent=11 // pred_region
          %s312 = ssub.s32 512, 512
          %313 = vsyncadd [#allocation6], %s312
          %s314 = sshll.u32 [#allocation7], 4
          %s315 = int_to_ptr.vmem [resolvable:$true] %s314
          %320 = dma.hbm_to_vmem [thread:$0]  %s3, 512, %s315, [#allocation6], 128, 128, 8
        $region24: #{tpu_custom_call.1} parent=11 // pred_fallthru
          _
        // Predicated region
        $region25: #{tpu_custom_call.1} parent=11 // pred_check
          %p321 = pneg %p151
        $region26: #{tpu_custom_call.1} parent=11 // pred_check_branch
          %323 = sbr.rel (%p321) target = $region28
        $region27: #{tpu_custom_call.1} parent=11 // pred_region
          _
        $region28: #{tpu_custom_call.1} parent=11 // pred_fallthru
          _
        // Predicated region
        $region29: #{tpu_custom_call.1} parent=11 // pred_check
          %p324 = pneg %p172
        $region30: #{tpu_custom_call.1} parent=11 // pred_check_branch
          %326 = sbr.rel (%p324) target = $region32
        $region31: #{tpu_custom_call.1} parent=11 // pred_region
          %s328 = ssub.s32 512, 512
          %329 = vsyncadd [#allocation9], %s328
          %s330 = sshll.u32 [#allocation8], 4
          %s331 = int_to_ptr.vmem [resolvable:$true] %s330
          %336 = dma.hbm_to_vmem [thread:$0]  %s5, 512, %s331, [#allocation9], 128, 128, 8
        $region32: #{tpu_custom_call.1} parent=11 // pred_fallthru
          _
        // Predicated region
        $region33: #{tpu_custom_call.1} parent=11 // pred_check
          %p337 = pneg %p193
        $region34: #{tpu_custom_call.1} parent=11 // pred_check_branch
          %339 = sbr.rel (%p337) target = $region36
        $region35: #{tpu_custom_call.1} parent=11 // pred_region
          _
        $region36: #{tpu_custom_call.1} parent=11 // pred_fallthru
          _
      $region12: #{tpu_custom_call.1} parent=5 // pred_fallthru
        _
      %p340 = scmp.lt.s32.totalorder %s27, 2
      // Predicated region
      $region37: #{tpu_custom_call.1} parent=5 // pred_check
        %p341 = pneg %p340
      $region38: #{tpu_custom_call.1} parent=5 // pred_check_branch
        %343 = sbr.rel (%p341) target = $region40
      $region39: #{tpu_custom_call.1} parent=5 // pred_region
        // Predicated region
        $region41: #{tpu_custom_call.1} parent=39 // pred_check
          %p344 = pneg %p61
        $region42: #{tpu_custom_call.1} parent=39 // pred_check_branch
          %346 = sbr.rel (%p344) target = $region44
        $region43: #{tpu_custom_call.1} parent=39 // pred_region
          %s347 = sand.u32 %s51, 1
          %s348 = scalar_lea.sflag [#allocation3], %s347
          %s349 = sand.u32 %s51, 1
          %s350 = smul.addr %s349, 8
          %s351 = scalar_lea.vmem [#allocation2], %s350
          %s353 = ssub.s32 128, 128
          %354 = vsyncadd %s348, %s353
          %s355 = sadd.s32 %s35, %s34
          %s356 = smul.addr %s355, 128
          %s357 = scalar_lea.hbm %s0, %s356
          %s359 = sshll.u32 %s351, 4
          %s360 = int_to_ptr.vmem [resolvable:$true] %s359
          %362 = dma.hbm_to_vmem [thread:$0]  %s357, 128, %s360, %s348
        $region44: #{tpu_custom_call.1} parent=39 // pred_fallthru
          _
      $region40: #{tpu_custom_call.1} parent=5 // pred_fallthru
        _
      %p363 = scmp.le.s32.totalorder 1, %s27
      %p364 = scmp.lt.s32.totalorder %s27, 3
      %p365 = pnand %p363, %p364
      %p366 = pneg %p365
      // Predicated region
      $region45: #{tpu_custom_call.1} parent=5 // pred_check
        _
      $region46: #{tpu_custom_call.1} parent=5 // pred_check_branch
        %368 = sbr.rel (%p365) target = $region48
      $region47: #{tpu_custom_call.1} parent=5 // pred_region
        %s369 = ssub.s32 %s27, 1
        %s370 = sand.u32 %s54, 1
        %s371 = scalar_lea.sflag [#allocation3], %s370
        %s372 = sand.u32 %s54, 1
        %s373 = smul.addr %s372, 8
        %s374 = scalar_lea.vmem [#allocation2], %s373
        // Predicated region
        $region49: #{tpu_custom_call.1} parent=47 // pred_check
          %p375 = pneg %p67
        $region50: #{tpu_custom_call.1} parent=47 // pred_check_branch
          %377 = sbr.rel (%p375) target = $region52
        $region51: #{tpu_custom_call.1} parent=47 // pred_region
          %378 = dma.done %s371, 128
        $region52: #{tpu_custom_call.1} parent=47 // pred_fallthru
          _
        // Predicated region
        $region53: #{tpu_custom_call.1} parent=47 // pred_check
          %p379 = pneg %p88
        $region54: #{tpu_custom_call.1} parent=47 // pred_check_branch
          %381 = sbr.rel (%p379) target = $region56
        $region55: #{tpu_custom_call.1} parent=47 // pred_region
          %382 = dma.done [#allocation6], 512
        $region56: #{tpu_custom_call.1} parent=47 // pred_fallthru
          _
        // Predicated region
        $region57: #{tpu_custom_call.1} parent=47 // pred_check
          %p383 = pneg %p130
        $region58: #{tpu_custom_call.1} parent=47 // pred_check_branch
          %385 = sbr.rel (%p383) target = $region60
        $region59: #{tpu_custom_call.1} parent=47 // pred_region
          %386 = dma.done [#allocation6], 512
        $region60: #{tpu_custom_call.1} parent=47 // pred_fallthru
          _
        // Predicated region
        $region61: #{tpu_custom_call.1} parent=47 // pred_check
          %p387 = pneg %p172
        $region62: #{tpu_custom_call.1} parent=47 // pred_check_branch
          %389 = sbr.rel (%p387) target = $region64
        $region63: #{tpu_custom_call.1} parent=47 // pred_region
          %390 = dma.done [#allocation9], 512
        $region64: #{tpu_custom_call.1} parent=47 // pred_fallthru
          _
        %s391 = sand.u32 %s54, 1
        %s392 = scalar_lea.sflag [#allocation3], %s391
        %s393 = sand.u32 %s54, 1
        %s394 = smul.addr %s393, 8
        %s395 = scalar_lea.vmem [#allocation2], %s394
        %p396 = pneg %p67
        %p397 = pneg %p64
        %p398 = pneg %p88
        %p399 = pneg %p85
        %p400 = pneg %p109
        %p401 = pneg %p106
        %p402 = pneg %p130
        %p403 = pneg %p127
        %p404 = pneg %p151
        %p405 = pneg %p148
        %p406 = pneg %p172
        %p407 = pneg %p169
        %p408 = pneg %p193
        %p409 = pneg %p190
        %p410 = pneg %p221
        %p411 = pneg %p218
        %s412 = sand.u32 %s208, 1
        %s413 = scalar_lea.sflag [#allocation4], %s412
        %s414 = sand.u32 %s208, 1
        %s415 = smul.addr %s414, 16
        %s416 = scalar_lea.vmem [#allocation10], %s415
        %p417 = pneg %p249
        %p418 = pneg %p246
        %s419 = sand.u32 %s32, 1
        %s420 = scalar_lea.sflag [#allocation12], %s419
        %s421 = sand.u32 %s236, 1
        %s422 = smul.addr %s421, 16
        %s423 = scalar_lea.vmem [#allocation11], %s422
        %p424 = pneg %p277
        %p425 = pneg %p274
        %s426 = sand.u32 %s32, 1
        %s427 = scalar_lea.sflag [#allocation12], %s426
        %s428 = sand.u32 %s264, 1
        %s429 = smul.addr %s428, 16
        %s430 = scalar_lea.vmem [#allocation13], %s429
        %v431 = vld [vmem:[%s374] sm:$0xff]
        %v432 = vld [vmem:[#allocation5] sm:$0xff]
        %v433 = vld [vmem:[#allocation5 + $0x8] sm:$0xff]
        %v434 = vld [vmem:[#allocation5 + $0x10] sm:$0xff]
        %v435 = vld [vmem:[#allocation5 + $0x18] sm:$0xff]
        %v436 = vld [vmem:[%s2] sm:$0x1]
        %v438 = vlaneseq
        %v439 = vshrl.u32 %v438, 7
        %v440 = vsub.s32 0, %v439
        %v441 = vrot.slane %v436, %v440
        %vm443 = vcmask 261120
        %v445 = vsel %vm443, %v431, 0
        %447 = vmatprep.subr.mxu0 0.0
        %448 = vmatpush1.msra.mxu0 %v432
        %449 = vmatprep.subr.mxu0 0.0
        %450 = vmatpush1.msra.mxu0 %v433
        %451 = vmatprep.subr.mxu0 0.0
        %452 = vmatpush1.msra.mxu0 %v434
        %453 = vmatprep.subr.mxu0 0.0
        %454 = vmatpush1.msra.mxu0 %v435
        %455 = vmatprep.subr.mxu0 0.0
        %456 = vmatpush1.msra.mxu0 0.0
        %457 = vmatprep.subr.mxu0 0.0
        %458 = vmatpush1.msra.mxu0 0.0
        %459 = vmatprep.subr.mxu0 0.0
        %460 = vmatpush1.msra.mxu0 0.0
        %461 = vmatprep.subr.mxu0 0.0
        %462 = vmatpush1.msra.mxu0 0.0
        %463 = vmatprep.subr.mxu0 0.0
        %464 = vmatpush1.msra.mxu0 0.0
        %465 = vmatprep.subr.mxu0 0.0
        %466 = vmatpush1.msra.mxu0 0.0
        %467 = vmatprep.subr.mxu0 0.0
        %468 = vmatpush1.msra.mxu0 0.0
        %469 = vmatprep.subr.mxu0 0.0
        %470 = vmatpush1.msra.mxu0 0.0
        %471 = vmatprep.subr.mxu0 0.0
        %472 = vmatpush1.msra.mxu0 0.0
        %473 = vmatprep.subr.mxu0 0.0
        %474 = vmatpush1.msra.mxu0 0.0
        %475 = vmatprep.subr.mxu0 0.0
        %476 = vmatpush1.msra.mxu0 0.0
        %477 = vmatprep.subr.mxu0 0.0
        %478 = vmatpush1.msra.mxu0 0.0
        %479 = vmatprep.subr.mxu0 0.0
        %480 = vmatpush1.msra.mxu0 0.0
        %481 = vmatprep.subr.mxu0 0.0
        %482 = vmatpush1.msra.mxu0 0.0
        %483 = vmatprep.subr.mxu0 0.0
        %484 = vmatpush1.msra.mxu0 0.0
        %485 = vmatprep.subr.mxu0 0.0
        %486 = vmatpush1.msra.mxu0 0.0
        %487 = vmatprep.subr.mxu0 0.0
        %488 = vmatpush1.msra.mxu0 0.0
        %489 = vmatprep.subr.mxu0 0.0
        %490 = vmatpush1.msra.mxu0 0.0
        %491 = vmatprep.subr.mxu0 0.0
        %492 = vmatpush1.msra.mxu0 0.0
        %493 = vmatprep.subr.mxu0 0.0
        %494 = vmatpush1.msra.mxu0 0.0
        %495 = vmatprep.subr.mxu0 0.0
        %496 = vmatpush1.msra.mxu0 0.0
        %497 = vmatprep.subr.mxu0 0.0
        %498 = vmatpush1.msra.mxu0 0.0
        %499 = vmatprep.subr.mxu0 0.0
        %500 = vmatpush1.msra.mxu0 0.0
        %501 = vmatprep.subr.mxu0 0.0
        %502 = vmatpush1.msra.mxu0 0.0
        %503 = vmatprep.subr.mxu0 0.0
        %504 = vmatpush1.msra.mxu0 0.0
        %505 = vmatprep.subr.mxu0 0.0
        %506 = vmatpush1.msra.mxu0 0.0
        %507 = vmatprep.subr.mxu0 0.0
        %508 = vmatpush1.msra.mxu0 0.0
        %509 = vmatprep.subr.mxu0 0.0
        %510 = vmatpush1.msra.mxu0 0.0
        %511 = vmatprep.mubr.f32.mxu0 0.0
        %512 = vmatmul.mubr.f32.gmra.mrb[0].mxu0 %v445
        %v513 = vpop.f32.mrb[0].mxu0
        %v514 = vadd.f32 %v441, %v513
        %v515 = vpop.f32.mrb[0].mxu0
        %516 = vdwg.mxu0
        %v517 = vmul.f32 %v514, 0.35355338
        %v518 = vld [vmem:[#allocation7] sm:$0xff]
        %v519 = vld [vmem:[#allocation7 + $0x8] sm:$0xff]
        %v520 = vld [vmem:[#allocation7 + $0x10] sm:$0xff]
        %v521 = vld [vmem:[#allocation7 + $0x18] sm:$0xff]
        %v522 = vld [vmem:[%s4] sm:$0x1]
        %v524 = vlaneseq
        %v525 = vshrl.u32 %v524, 7
        %v526 = vsub.s32 0, %v525
        %v527 = vrot.slane %v522, %v526
        %529 = vmatprep.subr.mxu0 0.0
        %530 = vmatpush1.msra.mxu0 %v518
        %531 = vmatprep.subr.mxu0 0.0
        %532 = vmatpush1.msra.mxu0 %v519
        %533 = vmatprep.subr.mxu0 0.0
        %534 = vmatpush1.msra.mxu0 %v520
        %535 = vmatprep.subr.mxu0 0.0
        %536 = vmatpush1.msra.mxu0 %v521
        %537 = vmatprep.subr.mxu0 0.0
        %538 = vmatpush1.msra.mxu0 0.0
        %539 = vmatprep.subr.mxu0 0.0
        %540 = vmatpush1.msra.mxu0 0.0
        %541 = vmatprep.subr.mxu0 0.0
        %542 = vmatpush1.msra.mxu0 0.0
        %543 = vmatprep.subr.mxu0 0.0
        %544 = vmatpush1.msra.mxu0 0.0
        %545 = vmatprep.subr.mxu0 0.0
        %546 = vmatpush1.msra.mxu0 0.0
        %547 = vmatprep.subr.mxu0 0.0
        %548 = vmatpush1.msra.mxu0 0.0
        %549 = vmatprep.subr.mxu0 0.0
        %550 = vmatpush1.msra.mxu0 0.0
        %551 = vmatprep.subr.mxu0 0.0
        %552 = vmatpush1.msra.mxu0 0.0
        %553 = vmatprep.subr.mxu0 0.0
        %554 = vmatpush1.msra.mxu0 0.0
        %555 = vmatprep.subr.mxu0 0.0
        %556 = vmatpush1.msra.mxu0 0.0
        %557 = vmatprep.subr.mxu0 0.0
        %558 = vmatpush1.msra.mxu0 0.0
        %559 = vmatprep.subr.mxu0 0.0
        %560 = vmatpush1.msra.mxu0 0.0
        %561 = vmatprep.subr.mxu0 0.0
        %562 = vmatpush1.msra.mxu0 0.0
        %563 = vmatprep.subr.mxu0 0.0
        %564 = vmatpush1.msra.mxu0 0.0
        %565 = vmatprep.subr.mxu0 0.0
        %566 = vmatpush1.msra.mxu0 0.0
        %567 = vmatprep.subr.mxu0 0.0
        %568 = vmatpush1.msra.mxu0 0.0
        %569 = vmatprep.subr.mxu0 0.0
        %570 = vmatpush1.msra.mxu0 0.0
        %571 = vmatprep.subr.mxu0 0.0
        %572 = vmatpush1.msra.mxu0 0.0
        %573 = vmatprep.subr.mxu0 0.0
        %574 = vmatpush1.msra.mxu0 0.0
        %575 = vmatprep.subr.mxu0 0.0
        %576 = vmatpush1.msra.mxu0 0.0
        %577 = vmatprep.subr.mxu0 0.0
        %578 = vmatpush1.msra.mxu0 0.0
        %579 = vmatprep.subr.mxu0 0.0
        %580 = vmatpush1.msra.mxu0 0.0
        %581 = vmatprep.subr.mxu0 0.0
        %582 = vmatpush1.msra.mxu0 0.0
        %583 = vmatprep.subr.mxu0 0.0
        %584 = vmatpush1.msra.mxu0 0.0
        %585 = vmatprep.subr.mxu0 0.0
        %586 = vmatpush1.msra.mxu0 0.0
        %587 = vmatprep.subr.mxu0 0.0
        %588 = vmatpush1.msra.mxu0 0.0
        %589 = vmatprep.subr.mxu0 0.0
        %590 = vmatpush1.msra.mxu0 0.0
        %591 = vmatprep.subr.mxu0 0.0
        %592 = vmatpush1.msra.mxu0 0.0
        %593 = vmatprep.mubr.f32.mxu0 0.0
        %594 = vmatmul.mubr.f32.gmra.mrb[0].mxu0 %v445
        %v595 = vpop.f32.mrb[0].mxu0
        %v596 = vadd.f32 %v527, %v595
        %v597 = vpop.f32.mrb[0].mxu0
        %598 = vdwg.mxu0
        %v599 = vld [vmem:[#allocation8] sm:$0xff]
        %v600 = vld [vmem:[#allocation8 + $0x8] sm:$0xff]
        %v601 = vld [vmem:[#allocation8 + $0x10] sm:$0xff]
        %v602 = vld [vmem:[#allocation8 + $0x18] sm:$0xff]
        %v603 = vld [vmem:[%s6] sm:$0x1]
        %v605 = vlaneseq
        %v606 = vshrl.u32 %v605, 7
        %v607 = vsub.s32 0, %v606
        %v608 = vrot.slane %v603, %v607
        %610 = vmatprep.subr.mxu0 0.0
        %611 = vmatpush1.msra.mxu0 %v599
        %612 = vmatprep.subr.mxu0 0.0
        %613 = vmatpush1.msra.mxu0 %v600
        %614 = vmatprep.subr.mxu0 0.0
        %615 = vmatpush1.msra.mxu0 %v601
        %616 = vmatprep.subr.mxu0 0.0
        %617 = vmatpush1.msra.mxu0 %v602
        %618 = vmatprep.subr.mxu0 0.0
        %619 = vmatpush1.msra.mxu0 0.0
        %620 = vmatprep.subr.mxu0 0.0
        %621 = vmatpush1.msra.mxu0 0.0
        %622 = vmatprep.subr.mxu0 0.0
        %623 = vmatpush1.msra.mxu0 0.0
        %624 = vmatprep.subr.mxu0 0.0
        %625 = vmatpush1.msra.mxu0 0.0
        %626 = vmatprep.subr.mxu0 0.0
        %627 = vmatpush1.msra.mxu0 0.0
        %628 = vmatprep.subr.mxu0 0.0
        %629 = vmatpush1.msra.mxu0 0.0
        %630 = vmatprep.subr.mxu0 0.0
        %631 = vmatpush1.msra.mxu0 0.0
        %632 = vmatprep.subr.mxu0 0.0
        %633 = vmatpush1.msra.mxu0 0.0
        %634 = vmatprep.subr.mxu0 0.0
        %635 = vmatpush1.msra.mxu0 0.0
        %636 = vmatprep.subr.mxu0 0.0
        %637 = vmatpush1.msra.mxu0 0.0
        %638 = vmatprep.subr.mxu0 0.0
        %639 = vmatpush1.msra.mxu0 0.0
        %640 = vmatprep.subr.mxu0 0.0
        %641 = vmatpush1.msra.mxu0 0.0
        %642 = vmatprep.subr.mxu0 0.0
        %643 = vmatpush1.msra.mxu0 0.0
        %644 = vmatprep.subr.mxu0 0.0
        %645 = vmatpush1.msra.mxu0 0.0
        %646 = vmatprep.subr.mxu0 0.0
        %647 = vmatpush1.msra.mxu0 0.0
        %648 = vmatprep.subr.mxu0 0.0
        %649 = vmatpush1.msra.mxu0 0.0
        %650 = vmatprep.subr.mxu0 0.0
        %651 = vmatpush1.msra.mxu0 0.0
        %652 = vmatprep.subr.mxu0 0.0
        %653 = vmatpush1.msra.mxu0 0.0
        %654 = vmatprep.subr.mxu0 0.0
        %655 = vmatpush1.msra.mxu0 0.0
        %656 = vmatprep.subr.mxu0 0.0
        %657 = vmatpush1.msra.mxu0 0.0
        %658 = vmatprep.subr.mxu0 0.0
        %659 = vmatpush1.msra.mxu0 0.0
        %660 = vmatprep.subr.mxu0 0.0
        %661 = vmatpush1.msra.mxu0 0.0
        %662 = vmatprep.subr.mxu0 0.0
        %663 = vmatpush1.msra.mxu0 0.0
        %664 = vmatprep.subr.mxu0 0.0
        %665 = vmatpush1.msra.mxu0 0.0
        %666 = vmatprep.subr.mxu0 0.0
        %667 = vmatpush1.msra.mxu0 0.0
        %668 = vmatprep.subr.mxu0 0.0
        %669 = vmatpush1.msra.mxu0 0.0
        %670 = vmatprep.subr.mxu0 0.0
        %671 = vmatpush1.msra.mxu0 0.0
        %672 = vmatprep.subr.mxu0 0.0
        %673 = vmatpush1.msra.mxu0 0.0
        %674 = vmatprep.mubr.f32.mxu0 0.0
        %675 = vmatmul.mubr.f32.gmra.mrb[0].mxu0 %v445
        %v676 = vpop.f32.mrb[0].mxu0
        %v677 = vadd.f32 %v608, %v676
        %v678 = vpop.f32.mrb[0].mxu0
        %679 = vdwg.mxu0
        %681 = vrot.lane.b32.xlu0 %v517, 120
        %v682 = vpop.permute.xlu0 %681
        %684 = vrot.lane.b32.xlu0 %v517, 112
        %v685 = vpop.permute.xlu0 %684
        %687 = vrot.lane.b32.xlu0 %v517, 104
        %v688 = vpop.permute.xlu0 %687
        %v690 = vcombine.low %v517, %v685
        %v691 = vcombine.high %v517, %v685
        %v693 = vunpack.c.l.s4 1983009808
        %v694 = vunpack.c.0.s8 %v693
        %v695 = vlaneseq
        %v696 = vshrl.u32 %v695, 7
        %v697 = vsub.s32 %v694, %v696
        %v698 = vrot.slane %v690, %v697
        %v700 = vunpack.c.l.s4 1983009808
        %v701 = vunpack.c.0.s8 %v700
        %v702 = vlaneseq
        %v703 = vshrl.u32 %v702, 7
        %v704 = vsub.s32 %v701, %v703
        %v705 = vrot.slane %v691, %v704
        %v706 = vcombine.low %v682, %v688
        %v707 = vcombine.high %v682, %v688
        %v709 = vunpack.c.l.s4 1983009808
        %v710 = vunpack.c.0.s8 %v709
        %v711 = vlaneseq
        %v712 = vshrl.u32 %v711, 7
        %v713 = vsub.s32 %v710, %v712
        %v714 = vrot.slane %v706, %v713
        %v716 = vunpack.c.l.s4 1983009808
        %v717 = vunpack.c.0.s8 %v716
        %v718 = vlaneseq
        %v719 = vshrl.u32 %v718, 7
        %v720 = vsub.s32 %v717, %v719
        %v721 = vrot.slane %v707, %v720
        %v722 = vcombine.low %v698, %v714
        %v723 = vcombine.high %v698, %v714
        %v725 = vunpack.c.l.s4 1934713408
        %v726 = vunpack.c.0.s8 %v725
        %v727 = vlaneseq
        %v728 = vshrl.u32 %v727, 7
        %v729 = vsub.s32 %v726, %v728
        %v730 = vrot.slane %v722, %v729
        %v732 = vunpack.c.l.s4 1934713408
        %v733 = vunpack.c.0.s8 %v732
        %v734 = vlaneseq
        %v735 = vshrl.u32 %v734, 7
        %v736 = vsub.s32 %v733, %v735
        %v737 = vrot.slane %v723, %v736
        %v738 = vcombine.low %v705, %v721
        %v739 = vcombine.high %v705, %v721
        %v741 = vunpack.c.l.s4 1934713408
        %v742 = vunpack.c.0.s8 %v741
        %v743 = vlaneseq
        %v744 = vshrl.u32 %v743, 7
        %v745 = vsub.s32 %v742, %v744
        %v746 = vrot.slane %v738, %v745
        %v748 = vunpack.c.l.s4 1934713408
        %v749 = vunpack.c.0.s8 %v748
        %v750 = vlaneseq
        %v751 = vshrl.u32 %v750, 7
        %v752 = vsub.s32 %v749, %v751
        %v753 = vrot.slane %v739, %v752
        %v754 = vcombine.high %v730, 0.0
        %v755 = vcombine.high %v737, 0.0
        %v756 = vcombine.high %v746, 0.0
        %v757 = vcombine.high %v753, 0.0
        %v758 = vcombine.low %v730, %v737
        %v760 = vunpack.c.l.s4 1983009808
        %v761 = vunpack.c.0.s8 %v760
        %v762 = vlaneseq
        %v763 = vshrl.u32 %v762, 7
        %v764 = vsub.s32 %v761, %v763
        %v765 = vrot.slane %v758, %v764
        %v766 = vcombine.low %v754, %v755
        %v768 = vunpack.c.l.s4 1983009808
        %v769 = vunpack.c.0.s8 %v768
        %v770 = vlaneseq
        %v771 = vshrl.u32 %v770, 7
        %v772 = vsub.s32 %v769, %v771
        %v773 = vrot.slane %v766, %v772
        %v774 = vcombine.low %v746, %v753
        %v776 = vunpack.c.l.s4 1983009808
        %v777 = vunpack.c.0.s8 %v776
        %v778 = vlaneseq
        %v779 = vshrl.u32 %v778, 7
        %v780 = vsub.s32 %v777, %v779
        %v781 = vrot.slane %v774, %v780
        %v782 = vcombine.low %v756, %v757
        %v784 = vunpack.c.l.s4 1983009808
        %v785 = vunpack.c.0.s8 %v784
        %v786 = vlaneseq
        %v787 = vshrl.u32 %v786, 7
        %v788 = vsub.s32 %v785, %v787
        %v789 = vrot.slane %v782, %v788
        %v790 = vcombine.low %v765, %v773
        %v791 = vcombine.high %v765, %v773
        %v793 = vunpack.c.l.s4 1934713408
        %v794 = vunpack.c.0.s8 %v793
        %v795 = vlaneseq
        %v796 = vshrl.u32 %v795, 7
        %v797 = vsub.s32 %v794, %v796
        %v798 = vrot.slane %v790, %v797
        %v800 = vunpack.c.l.s4 1934713408
        %v801 = vunpack.c.0.s8 %v800
        %v802 = vlaneseq
        %v803 = vshrl.u32 %v802, 7
        %v804 = vsub.s32 %v801, %v803
        %v805 = vrot.slane %v791, %v804
        %v806 = vcombine.low %v781, %v789
        %v807 = vcombine.high %v781, %v789
        %v809 = vunpack.c.l.s4 1934713408
        %v810 = vunpack.c.0.s8 %v809
        %v811 = vlaneseq
        %v812 = vshrl.u32 %v811, 7
        %v813 = vsub.s32 %v810, %v812
        %v814 = vrot.slane %v806, %v813
        %v816 = vunpack.c.l.s4 1934713408
        %v817 = vunpack.c.0.s8 %v816
        %v818 = vlaneseq
        %v819 = vshrl.u32 %v818, 7
        %v820 = vsub.s32 %v817, %v819
        %v821 = vrot.slane %v807, %v820
        %v822 = vcombine.low %v798, %v814
        %v823 = vcombine.high %v798, %v814
        %v824 = vcombine.low %v805, %v821
        %v825 = vcombine.high %v805, %v821
        %v826 = vpack.c.bf16 %v822, %v822
        %v827 = vpack.c.bf16 %v823, %v823
        %v828 = vpack.c.bf16 %v824, %v824
        %v829 = vpack.c.bf16 %v825, %v825
        %vm830 = vcmask 60416
        %831 = vst.msk [vmem:[%s416] sm:$0xf] %vm830, %v826
        %832 = vst.msk [vmem:[%s416 + $0x4] sm:$0xf] %vm830, %v827
        %833 = vst.msk [vmem:[%s416 + $0x8] sm:$0xf] %vm830, %v828
        %834 = vst.msk [vmem:[%s416 + $0xc] sm:$0xf] %vm830, %v829
        %836 = vrot.lane.b32.xlu0 %v596, 120
        %v837 = vpop.permute.xlu0 %836
        %839 = vrot.lane.b32.xlu0 %v596, 112
        %v840 = vpop.permute.xlu0 %839
        %842 = vrot.lane.b32.xlu0 %v596, 104
        %v843 = vpop.permute.xlu0 %842
        %v845 = vcombine.low %v596, %v840
        %v846 = vcombine.high %v596, %v840
        %v848 = vunpack.c.l.s4 1983009808
        %v849 = vunpack.c.0.s8 %v848
        %v850 = vlaneseq
        %v851 = vshrl.u32 %v850, 7
        %v852 = vsub.s32 %v849, %v851
        %v853 = vrot.slane %v845, %v852
        %v855 = vunpack.c.l.s4 1983009808
        %v856 = vunpack.c.0.s8 %v855
        %v857 = vlaneseq
        %v858 = vshrl.u32 %v857, 7
        %v859 = vsub.s32 %v856, %v858
        %v860 = vrot.slane %v846, %v859
        %v861 = vcombine.low %v837, %v843
        %v862 = vcombine.high %v837, %v843
        %v864 = vunpack.c.l.s4 1983009808
        %v865 = vunpack.c.0.s8 %v864
        %v866 = vlaneseq
        %v867 = vshrl.u32 %v866, 7
        %v868 = vsub.s32 %v865, %v867
        %v869 = vrot.slane %v861, %v868
        %v871 = vunpack.c.l.s4 1983009808
        %v872 = vunpack.c.0.s8 %v871
        %v873 = vlaneseq
        %v874 = vshrl.u32 %v873, 7
        %v875 = vsub.s32 %v872, %v874
        %v876 = vrot.slane %v862, %v875
        %v877 = vcombine.low %v853, %v869
        %v878 = vcombine.high %v853, %v869
        %v880 = vunpack.c.l.s4 1934713408
        %v881 = vunpack.c.0.s8 %v880
        %v882 = vlaneseq
        %v883 = vshrl.u32 %v882, 7
        %v884 = vsub.s32 %v881, %v883
        %v885 = vrot.slane %v877, %v884
        %v887 = vunpack.c.l.s4 1934713408
        %v888 = vunpack.c.0.s8 %v887
        %v889 = vlaneseq
        %v890 = vshrl.u32 %v889, 7
        %v891 = vsub.s32 %v888, %v890
        %v892 = vrot.slane %v878, %v891
        %v893 = vcombine.low %v860, %v876
        %v894 = vcombine.high %v860, %v876
        %v896 = vunpack.c.l.s4 1934713408
        %v897 = vunpack.c.0.s8 %v896
        %v898 = vlaneseq
        %v899 = vshrl.u32 %v898, 7
        %v900 = vsub.s32 %v897, %v899
        %v901 = vrot.slane %v893, %v900
        %v903 = vunpack.c.l.s4 1934713408
        %v904 = vunpack.c.0.s8 %v903
        %v905 = vlaneseq
        %v906 = vshrl.u32 %v905, 7
        %v907 = vsub.s32 %v904, %v906
        %v908 = vrot.slane %v894, %v907
        %v909 = vcombine.high %v885, 0.0
        %v910 = vcombine.high %v892, 0.0
        %v911 = vcombine.high %v901, 0.0
        %v912 = vcombine.high %v908, 0.0
        %v913 = vcombine.low %v885, %v892
        %v915 = vunpack.c.l.s4 1983009808
        %v916 = vunpack.c.0.s8 %v915
        %v917 = vlaneseq
        %v918 = vshrl.u32 %v917, 7
        %v919 = vsub.s32 %v916, %v918
        %v920 = vrot.slane %v913, %v919
        %v921 = vcombine.low %v909, %v910
        %v923 = vunpack.c.l.s4 1983009808
        %v924 = vunpack.c.0.s8 %v923
        %v925 = vlaneseq
        %v926 = vshrl.u32 %v925, 7
        %v927 = vsub.s32 %v924, %v926
        %v928 = vrot.slane %v921, %v927
        %v929 = vcombine.low %v901, %v908
        %v931 = vunpack.c.l.s4 1983009808
        %v932 = vunpack.c.0.s8 %v931
        %v933 = vlaneseq
        %v934 = vshrl.u32 %v933, 7
        %v935 = vsub.s32 %v932, %v934
        %v936 = vrot.slane %v929, %v935
        %v937 = vcombine.low %v911, %v912
        %v939 = vunpack.c.l.s4 1983009808
        %v940 = vunpack.c.0.s8 %v939
        %v941 = vlaneseq
        %v942 = vshrl.u32 %v941, 7
        %v943 = vsub.s32 %v940, %v942
        %v944 = vrot.slane %v937, %v943
        %v945 = vcombine.low %v920, %v928
        %v946 = vcombine.high %v920, %v928
        %v948 = vunpack.c.l.s4 1934713408
        %v949 = vunpack.c.0.s8 %v948
        %v950 = vlaneseq
        %v951 = vshrl.u32 %v950, 7
        %v952 = vsub.s32 %v949, %v951
        %v953 = vrot.slane %v945, %v952
        %v955 = vunpack.c.l.s4 1934713408
        %v956 = vunpack.c.0.s8 %v955
        %v957 = vlaneseq
        %v958 = vshrl.u32 %v957, 7
        %v959 = vsub.s32 %v956, %v958
        %v960 = vrot.slane %v946, %v959
        %v961 = vcombine.low %v936, %v944
        %v962 = vcombine.high %v936, %v944
        %v964 = vunpack.c.l.s4 1934713408
        %v965 = vunpack.c.0.s8 %v964
        %v966 = vlaneseq
        %v967 = vshrl.u32 %v966, 7
        %v968 = vsub.s32 %v965, %v967
        %v969 = vrot.slane %v961, %v968
        %v971 = vunpack.c.l.s4 1934713408
        %v972 = vunpack.c.0.s8 %v971
        %v973 = vlaneseq
        %v974 = vshrl.u32 %v973, 7
        %v975 = vsub.s32 %v972, %v974
        %v976 = vrot.slane %v962, %v975
        %v977 = vcombine.low %v953, %v969
        %v978 = vcombine.high %v953, %v969
        %v979 = vcombine.low %v960, %v976
        %v980 = vcombine.high %v960, %v976
        %v981 = vpack.c.bf16 %v977, %v977
        %v982 = vpack.c.bf16 %v978, %v978
        %v983 = vpack.c.bf16 %v979, %v979
        %v984 = vpack.c.bf16 %v980, %v980
        %985 = vst.msk [vmem:[%s423] sm:$0xf] %vm830, %v981
        %986 = vst.msk [vmem:[%s423 + $0x4] sm:$0xf] %vm830, %v982
        %987 = vst.msk [vmem:[%s423 + $0x8] sm:$0xf] %vm830, %v983
        %988 = vst.msk [vmem:[%s423 + $0xc] sm:$0xf] %vm830, %v984
        %990 = vrot.lane.b32.xlu0 %v677, 120
        %v991 = vpop.permute.xlu0 %990
        %993 = vrot.lane.b32.xlu0 %v677, 112
        %v994 = vpop.permute.xlu0 %993
        %996 = vrot.lane.b32.xlu0 %v677, 104
        %v997 = vpop.permute.xlu0 %996
        %v999 = vcombine.low %v677, %v994
        %v1000 = vcombine.high %v677, %v994
        %v1002 = vunpack.c.l.s4 1983009808
        %v1003 = vunpack.c.0.s8 %v1002
        %v1004 = vlaneseq
        %v1005 = vshrl.u32 %v1004, 7
        %v1006 = vsub.s32 %v1003, %v1005
        %v1007 = vrot.slane %v999, %v1006
        %v1009 = vunpack.c.l.s4 1983009808
        %v1010 = vunpack.c.0.s8 %v1009
        %v1011 = vlaneseq
        %v1012 = vshrl.u32 %v1011, 7
        %v1013 = vsub.s32 %v1010, %v1012
        %v1014 = vrot.slane %v1000, %v1013
        %v1015 = vcombine.low %v991, %v997
        %v1016 = vcombine.high %v991, %v997
        %v1018 = vunpack.c.l.s4 1983009808
        %v1019 = vunpack.c.0.s8 %v1018
        %v1020 = vlaneseq
        %v1021 = vshrl.u32 %v1020, 7
        %v1022 = vsub.s32 %v1019, %v1021
        %v1023 = vrot.slane %v1015, %v1022
        %v1025 = vunpack.c.l.s4 1983009808
        %v1026 = vunpack.c.0.s8 %v1025
        %v1027 = vlaneseq
        %v1028 = vshrl.u32 %v1027, 7
        %v1029 = vsub.s32 %v1026, %v1028
        %v1030 = vrot.slane %v1016, %v1029
        %v1031 = vcombine.low %v1007, %v1023
        %v1032 = vcombine.high %v1007, %v1023
        %v1034 = vunpack.c.l.s4 1934713408
        %v1035 = vunpack.c.0.s8 %v1034
        %v1036 = vlaneseq
        %v1037 = vshrl.u32 %v1036, 7
        %v1038 = vsub.s32 %v1035, %v1037
        %v1039 = vrot.slane %v1031, %v1038
        %v1041 = vunpack.c.l.s4 1934713408
        %v1042 = vunpack.c.0.s8 %v1041
        %v1043 = vlaneseq
        %v1044 = vshrl.u32 %v1043, 7
        %v1045 = vsub.s32 %v1042, %v1044
        %v1046 = vrot.slane %v1032, %v1045
        %v1047 = vcombine.low %v1014, %v1030
        %v1048 = vcombine.high %v1014, %v1030
        %v1050 = vunpack.c.l.s4 1934713408
        %v1051 = vunpack.c.0.s8 %v1050
        %v1052 = vlaneseq
        %v1053 = vshrl.u32 %v1052, 7
        %v1054 = vsub.s32 %v1051, %v1053
        %v1055 = vrot.slane %v1047, %v1054
        %v1057 = vunpack.c.l.s4 1934713408
        %v1058 = vunpack.c.0.s8 %v1057
        %v1059 = vlaneseq
        %v1060 = vshrl.u32 %v1059, 7
        %v1061 = vsub.s32 %v1058, %v1060
        %v1062 = vrot.slane %v1048, %v1061
        %v1063 = vcombine.high %v1039, 0.0
        %v1064 = vcombine.high %v1046, 0.0
        %v1065 = vcombine.high %v1055, 0.0
        %v1066 = vcombine.high %v1062, 0.0
        %v1067 = vcombine.low %v1039, %v1046
        %v1069 = vunpack.c.l.s4 1983009808
        %v1070 = vunpack.c.0.s8 %v1069
        %v1071 = vlaneseq
        %v1072 = vshrl.u32 %v1071, 7
        %v1073 = vsub.s32 %v1070, %v1072
        %v1074 = vrot.slane %v1067, %v1073
        %v1075 = vcombine.low %v1063, %v1064
        %v1077 = vunpack.c.l.s4 1983009808
        %v1078 = vunpack.c.0.s8 %v1077
        %v1079 = vlaneseq
        %v1080 = vshrl.u32 %v1079, 7
        %v1081 = vsub.s32 %v1078, %v1080
        %v1082 = vrot.slane %v1075, %v1081
        %v1083 = vcombine.low %v1055, %v1062
        %v1085 = vunpack.c.l.s4 1983009808
        %v1086 = vunpack.c.0.s8 %v1085
        %v1087 = vlaneseq
        %v1088 = vshrl.u32 %v1087, 7
        %v1089 = vsub.s32 %v1086, %v1088
        %v1090 = vrot.slane %v1083, %v1089
        %v1091 = vcombine.low %v1065, %v1066
        %v1093 = vunpack.c.l.s4 1983009808
        %v1094 = vunpack.c.0.s8 %v1093
        %v1095 = vlaneseq
        %v1096 = vshrl.u32 %v1095, 7
        %v1097 = vsub.s32 %v1094, %v1096
        %v1098 = vrot.slane %v1091, %v1097
        %v1099 = vcombine.low %v1074, %v1082
        %v1100 = vcombine.high %v1074, %v1082
        %v1102 = vunpack.c.l.s4 1934713408
        %v1103 = vunpack.c.0.s8 %v1102
        %v1104 = vlaneseq
        %v1105 = vshrl.u32 %v1104, 7
        %v1106 = vsub.s32 %v1103, %v1105
        %v1107 = vrot.slane %v1099, %v1106
        %v1109 = vunpack.c.l.s4 1934713408
        %v1110 = vunpack.c.0.s8 %v1109
        %v1111 = vlaneseq
        %v1112 = vshrl.u32 %v1111, 7
        %v1113 = vsub.s32 %v1110, %v1112
        %v1114 = vrot.slane %v1100, %v1113
        %v1115 = vcombine.low %v1090, %v1098
        %v1116 = vcombine.high %v1090, %v1098
        %v1118 = vunpack.c.l.s4 1934713408
        %v1119 = vunpack.c.0.s8 %v1118
        %v1120 = vlaneseq
        %v1121 = vshrl.u32 %v1120, 7
        %v1122 = vsub.s32 %v1119, %v1121
        %v1123 = vrot.slane %v1115, %v1122
        %v1125 = vunpack.c.l.s4 1934713408
        %v1126 = vunpack.c.0.s8 %v1125
        %v1127 = vlaneseq
        %v1128 = vshrl.u32 %v1127, 7
        %v1129 = vsub.s32 %v1126, %v1128
        %v1130 = vrot.slane %v1116, %v1129
        %v1131 = vcombine.low %v1107, %v1123
        %v1132 = vcombine.high %v1107, %v1123
        %v1133 = vcombine.low %v1114, %v1130
        %v1134 = vcombine.high %v1114, %v1130
        %v1135 = vpack.c.bf16 %v1131, %v1131
        %v1136 = vpack.c.bf16 %v1132, %v1132
        %v1137 = vpack.c.bf16 %v1133, %v1133
        %v1138 = vpack.c.bf16 %v1134, %v1134
        %1139 = vst.msk [vmem:[%s430] sm:$0xf] %vm830, %v1135
        %1140 = vst.msk [vmem:[%s430 + $0x4] sm:$0xf] %vm830, %v1136
        %1141 = vst.msk [vmem:[%s430 + $0x8] sm:$0xf] %vm830, %v1137
        %1142 = vst.msk [vmem:[%s430 + $0xc] sm:$0xf] %vm830, %v1138
        %s1143 = sand.u32 %s208, 1
        %s1144 = scalar_lea.sflag [#allocation4], %s1143
        %s1145 = sand.u32 %s208, 1
        %s1146 = smul.addr %s1145, 16
        %s1147 = scalar_lea.vmem [#allocation10], %s1146
        %s1148 = sand.u32 %s32, 1
        %s1149 = scalar_lea.sflag [#allocation12], %s1148
        %s1150 = sand.u32 %s236, 1
        %s1151 = smul.addr %s1150, 16
        %s1152 = scalar_lea.vmem [#allocation11], %s1151
        %s1153 = sand.u32 %s32, 1
        %s1154 = scalar_lea.sflag [#allocation12], %s1153
        %s1155 = sand.u32 %s264, 1
        %s1156 = smul.addr %s1155, 16
        %s1157 = scalar_lea.vmem [#allocation13], %s1156
        // Predicated region
        $region65: #{tpu_custom_call.1} parent=47 // pred_check
          %p1158 = pneg %p218
        $region66: #{tpu_custom_call.1} parent=47 // pred_check_branch
          %1160 = sbr.rel (%p1158) target = $region68
        $region67: #{tpu_custom_call.1} parent=47 // pred_region
          %s1162 = ssub.s32 256, 256
          %1163 = vsyncadd %s1144, %s1162
          %s1164 = smul.addr %s36, 4
          %s1165 = sadd.s32 %s37, %s1164
          %s1166 = smul.addr %s1165, 64
          %s1167 = scalar_lea.hbm %s7, %s1166
          %s1168 = sshll.u32 %s1147, 4
          %s1169 = int_to_ptr.vmem [resolvable:$true] %s1168
          %1174 = dma.vmem_to_hbm [thread:$0]  %s1169, 256, %s1167, %s1144, 64, 64, 4
        $region68: #{tpu_custom_call.1} parent=47 // pred_fallthru
          _
        // Predicated region
        $region69: #{tpu_custom_call.1} parent=47 // pred_check
          %p1175 = pneg %p246
        $region70: #{tpu_custom_call.1} parent=47 // pred_check_branch
          %1177 = sbr.rel (%p1175) target = $region72
        $region71: #{tpu_custom_call.1} parent=47 // pred_region
          %s1179 = ssub.s32 256, 256
          %1180 = vsyncadd %s1149, %s1179
          %s1181 = smul.addr %s36, 4
          %s1182 = sadd.s32 %s37, %s1181
          %s1183 = smul.addr %s1182, 64
          %s1184 = scalar_lea.hbm %s8, %s1183
          %s1185 = sshll.u32 %s1152, 4
          %s1186 = int_to_ptr.vmem [resolvable:$true] %s1185
          %1191 = dma.vmem_to_hbm [thread:$0]  %s1186, 256, %s1184, %s1149, 64, 64, 4
        $region72: #{tpu_custom_call.1} parent=47 // pred_fallthru
          _
        // Predicated region
        $region73: #{tpu_custom_call.1} parent=47 // pred_check
          %p1192 = pneg %p274
        $region74: #{tpu_custom_call.1} parent=47 // pred_check_branch
          %1194 = sbr.rel (%p1192) target = $region76
        $region75: #{tpu_custom_call.1} parent=47 // pred_region
          %s1196 = ssub.s32 256, 256
          %1197 = vsyncadd %s1154, %s1196
          %s1198 = smul.addr %s36, 4
          %s1199 = sadd.s32 %s37, %s1198
          %s1200 = smul.addr %s1199, 64
          %s1201 = scalar_lea.hbm %s9, %s1200
          %s1202 = sshll.u32 %s1157, 4
          %s1203 = int_to_ptr.vmem [resolvable:$true] %s1202
          %1208 = dma.vmem_to_hbm [thread:$0]  %s1203, 256, %s1201, %s1154, 64, 64, 4
        $region76: #{tpu_custom_call.1} parent=47 // pred_fallthru
          _
      $region48: #{tpu_custom_call.1} parent=5 // pred_fallthru
        _
      %p1209 = scmp.le.s32.totalorder 2, %s27
      // Predicated region
      $region77: #{tpu_custom_call.1} parent=5 // pred_check
        %p1210 = pneg %p1209
      $region78: #{tpu_custom_call.1} parent=5 // pred_check_branch
        %1212 = sbr.rel (%p1210) target = $region80
      $region79: #{tpu_custom_call.1} parent=5 // pred_region
        %s1213 = ssub.s32 %s27, 2
        // Predicated region
        $region81: #{tpu_custom_call.1} parent=79 // pred_check
          %p1214 = pneg %p224
        $region82: #{tpu_custom_call.1} parent=79 // pred_check_branch
          %1216 = sbr.rel (%p1214) target = $region84
        $region83: #{tpu_custom_call.1} parent=79 // pred_region
          %s1217 = sand.u32 %s209, 1
          %s1218 = scalar_lea.sflag [#allocation4], %s1217
          %s1219 = sand.u32 %s209, 1
          %s1220 = smul.addr %s1219, 16
          %s1221 = scalar_lea.vmem [#allocation10], %s1220
          %1222 = dma.done %s1218, 256
        $region84: #{tpu_custom_call.1} parent=79 // pred_fallthru
          _
        // Predicated region
        $region85: #{tpu_custom_call.1} parent=79 // pred_check
          %p1223 = pneg %p252
        $region86: #{tpu_custom_call.1} parent=79 // pred_check_branch
          %1225 = sbr.rel (%p1223) target = $region88
        $region87: #{tpu_custom_call.1} parent=79 // pred_region
          %s1226 = sand.u32 %s33, 1
          %s1227 = scalar_lea.sflag [#allocation12], %s1226
          %s1228 = sand.u32 %s237, 1
          %s1229 = smul.addr %s1228, 16
          %s1230 = scalar_lea.vmem [#allocation11], %s1229
          %1231 = dma.done %s1227, 256
        $region88: #{tpu_custom_call.1} parent=79 // pred_fallthru
          _
        // Predicated region
        $region89: #{tpu_custom_call.1} parent=79 // pred_check
          %p1232 = pneg %p280
        $region90: #{tpu_custom_call.1} parent=79 // pred_check_branch
          %1234 = sbr.rel (%p1232) target = $region92
        $region91: #{tpu_custom_call.1} parent=79 // pred_region
          %s1235 = sand.u32 %s33, 1
          %s1236 = scalar_lea.sflag [#allocation12], %s1235
          %s1237 = sand.u32 %s265, 1
          %s1238 = smul.addr %s1237, 16
          %s1239 = scalar_lea.vmem [#allocation13], %s1238
          %1240 = dma.done %s1236, 256
        $region92: #{tpu_custom_call.1} parent=79 // pred_fallthru
          _
      $region80: #{tpu_custom_call.1} parent=5 // pred_fallthru
        _
    $region6: #{tpu_custom_call.1} parent=1 // loop_footer
      %s31 = sadd.s32 1, %s27
    $region7: #{tpu_custom_call.1} parent=1 // loop_footer_branch
      %26 = sbr.rel target = $region3
    $region8: #{tpu_custom_call.1} parent=1 // loop_exit
      _
    %1241 = vsyncpa [#allocation3], 1
    %s1242 = scalar_lea.sflag [#allocation3], 1
    %1243 = vsyncpa %s1242, 1
    %1244 = vsyncpa [#allocation6], 1
    %1245 = vsyncpa [#allocation9], 1
    %1246 = vsyncpa [#allocation4], 1
    %s1247 = scalar_lea.sflag [#allocation4], 1
    %1248 = vsyncpa %s1247, 1
    %1249 = vsyncpa [#allocation12], 1
    %s1250 = scalar_lea.sflag [#allocation12], 1
    %1251 = vsyncpa %s1250, 1

</llo_original>
